<compile_context>
chip_gen: v7x
topology: tpu7x:2x2x1
jax: 0.10.0
libtpu: 0.0.40
codegen_flags: <defaults>
</compile_context>

<pallas_src>
import jax
import jax.numpy as jnp
from jax.experimental import pallas as pl
from jax.experimental.pallas import tpu as pltpu


def aux_head_kernel(x_ref, wt_ref, b_ref, *out_refs):
    # x_ref: (TB, F); wt_ref: (F, A) pre-transposed; b_ref: (1, A) f32.
    x = x_ref[...]
    wt = wt_ref[...]
    b = b_ref[...].astype(jnp.float32)

    # Linear: (TB, F) @ (F, A) on the MXU with f32 accumulation (bf16 or f32 in).
    logits = jnp.dot(x, wt, preferred_element_type=jnp.float32) + b

    if len(out_refs) == 2:
        logits_ref, probs_ref = out_refs
        logits_ref[...] = logits.astype(logits_ref.dtype)
    else:
        (probs_ref,) = out_refs

    # Softmax over dim=1 (last axis of the 2-D logits), stable, f32 math,
    # exact normalization (review: approx reciprocal is not worth the error here).
    m = jnp.max(logits, axis=-1, keepdims=True)
    e = jnp.exp(logits - m)
    s = jnp.sum(e, axis=-1, keepdims=True)
    probs_ref[...] = (e / s).astype(probs_ref.dtype)


def _device_kind() -> str:
    try:
        return jax.devices()[0].device_kind.lower()
    except Exception:
        return ""


def _generation_budgets():
    """Returns (per-x-buffer byte budget, vmem_limit cap, is_v7x)."""
    kind = _device_kind()
    if "7" in kind:                                   # v7x: 64 MiB physical VMEM
        return 8 << 20, 48 << 20, True
    if "v6" in kind or "v5e" in kind or "v5 lite" in kind or "v5lite" in kind:
        return 16 << 20, 100 << 20, False             # 128 MiB physical VMEM
    return 8 << 20, 32 << 20, False                   # unknown/older: conservative


def _sublane_pack(dtype) -> int:
    # Native sublane packing: 8 for f32, 16 for bf16, 32 for int8/fp8.
    return max(8, 32 // jnp.dtype(dtype).itemsize)


def _pick_batch_tile(B: int, F: int, dtype, x_buf_budget: int) -> int:
    """Largest batch tile whose x slab fits the per-buffer byte budget."""
    itemsize = jnp.dtype(dtype).itemsize
    pack = _sublane_pack(dtype)
    rows = x_buf_budget // max(1, F * itemsize)
    rows = max(pack, (rows // pack) * pack)
    return B if rows >= B else rows


def auxiliary_head(x, weight, bias, *, return_logits=True, batch_tile=None,
                   use_pallas=None):
    """x: (B, F); weight: (num_aux, F) PyTorch layout; bias: (num_aux,)."""
    B, F = x.shape
    A = weight.shape[0]
    out_dtype = x.dtype

    if use_pallas is None:
        # Tiny problems are pure launch overhead in Pallas -> let XLA fuse them.
        use_pallas = (B * F + B * A) * jnp.dtype(x.dtype).itemsize >= (256 << 10)

    if not use_pallas:
        logits = (jnp.dot(x, weight.T, preferred_element_type=jnp.float32)
                  + bias.astype(jnp.float32))
        probs = jax.nn.softmax(logits, axis=-1)
        logits = logits.astype(out_dtype)
        probs = probs.astype(out_dtype)
        if return_logits:
            return jnp.squeeze(logits), jnp.squeeze(probs)
        return jnp.squeeze(probs)

    x_budget, vmem_cap, is_v7x = _generation_budgets()
    TB = batch_tile if batch_tile is not None else _pick_batch_tile(B, F, x.dtype, x_budget)
    TB = min(TB, B)
    num_blocks = pl.cdiv(B, TB)

    w_t = weight.T                          # (F, A): one tiny wrapper-side transpose
    b2d = bias.reshape(1, A).astype(jnp.float32)

    n_out = 2 if return_logits else 1
    out_itemsize = jnp.dtype(out_dtype).itemsize

    # Real VMEM footprint -> explicit per-generation limit (with headroom).
    footprint = (2 * TB * F * x.dtype.itemsize          # double-buffered x tiles
                 + F * A * w_t.dtype.itemsize            # single-buffered weight
                 + 128 * 4                               # padded (1, A) bias row
                 + n_out * 2 * TB * A * out_itemsize)    # double-buffered outputs
    vmem_limit = int(min(vmem_cap, max(footprint + (8 << 20), 32 << 20)))

    out_shape = [jax.ShapeDtypeStruct((B, A), out_dtype) for _ in range(n_out)]
    out_specs = [pl.BlockSpec((TB, A), lambda i: (i, 0)) for _ in range(n_out)]

    cost = pl.CostEstimate(
        flops=2 * B * F * A,
        transcendentals=B * A,                            # one exp per logit
        bytes_accessed=(x.size * x.dtype.itemsize
                        + weight.size * weight.dtype.itemsize
                        + bias.size * bias.dtype.itemsize
                        + n_out * B * A * out_itemsize),
    )

    def build(fancy):
        if fancy:
            # Single-buffer the grid-invariant operands; CORE_PARALLEL on v7x.
            def const_spec(shape):
                return pl.BlockSpec(shape, lambda i: (0, 0),
                                    pipeline_mode=pl.Buffered(1))
            sems = ((pltpu.CORE_PARALLEL,) if (is_v7x and num_blocks >= 2)
                    else ("parallel",))
        else:
            def const_spec(shape):
                return pl.BlockSpec(shape, lambda i: (0, 0))
            sems = ("parallel",)

        return pl.pallas_call(
            aux_head_kernel,
            out_shape=tuple(out_shape) if n_out == 2 else out_shape[0],
            grid=(num_blocks,),
            in_specs=[
                pl.BlockSpec((TB, F), lambda i: (i, 0)),  # x: batch-tiled, double-buffered
                const_spec((F, A)),                       # weight: VMEM-resident
                const_spec((1, A)),                       # bias: VMEM-resident
            ],
            out_specs=tuple(out_specs) if n_out == 2 else out_specs[0],
            compiler_params=pltpu.CompilerParams(
                dimension_semantics=sems,
                vmem_limit_bytes=vmem_limit,
            ),
            cost_estimate=cost,
        )

    try:
        outs = build(fancy=True)(x, w_t, b2d)
    except Exception:
        # Conservative retry: default double-buffering + plain "parallel".
        outs = build(fancy=False)(x, w_t, b2d)

    # PyTorch `.squeeze()` drops all size-1 dims.  NOTE: for B == 1 the torch
    # module would actually error (Softmax(dim=1) on a 1-D tensor); here the
    # softmax always runs over the num_aux axis of the 2-D logits.
    if return_logits:
        logits, probs = outs
        return jnp.squeeze(logits), jnp.squeeze(probs)
    return jnp.squeeze(outs)


if __name__ == "__main__":
    key = jax.random.PRNGKey(0)
    kx, kw, kb = jax.random.split(key, 3)

    # --- Small, module-sized case (batch=2, in_features=32, num_aux=8), f32 ---
    B, in_features, num_aux = 2, 32, 8
    x = jax.random.normal(kx, (B, in_features), dtype=jnp.float32)
    weight = jax.random.normal(kw, (num_aux, in_features), dtype=jnp.float32) * 0.1
    bias = jax.random.normal(kb, (num_aux,), dtype=jnp.float32) * 0.1

    # Force the Pallas path (the auto heuristic would hand this tiny shape to XLA).
    logits, probs = auxiliary_head(x, weight, bias, use_pallas=True)
    jax.block_until_ready((logits, probs))

    ref_logits = x @ weight.T + bias
    ref_probs = jax.nn.softmax(ref_logits, axis=1)
    assert logits.shape == (B, num_aux) and probs.shape == (B, num_aux)
    assert jnp.allclose(logits, ref_logits, atol=1e-5, rtol=1e-5)
    assert jnp.allclose(probs, ref_probs, atol=1e-4, rtol=1e-4)
    assert jnp.allclose(jnp.sum(probs, axis=-1), 1.0, atol=1e-4)

    # Probs-only variant (skips the logits HBM write entirely).
    probs_only = auxiliary_head(x, weight, bias, use_pallas=True, return_logits=False)
    jax.block_until_ready(probs_only)
    assert jnp.allclose(probs_only, ref_probs, atol=1e-4, rtol=1e-4)

    # --- bf16 production path with a multi-step grid (batch_tile override) ---
    B2 = 32
    x2 = jax.random.normal(kx, (B2, in_features), dtype=jnp.float32)
    x2_bf = x2.astype(jnp.bfloat16)
    w_bf = weight.astype(jnp.bfloat16)
    logits_bf, probs_bf = auxiliary_head(x2_bf, w_bf, bias,
                                         use_pallas=True, batch_tile=8)
    jax.block_until_ready((logits_bf, probs_bf))

    ref_logits2 = x2_bf.astype(jnp.float32) @ w_bf.astype(jnp.float32).T + bias
    ref_probs2 = jax.nn.softmax(ref_logits2, axis=1)
    assert jnp.allclose(logits_bf.astype(jnp.float32), ref_logits2, atol=5e-2, rtol=5e-2)
    assert jnp.allclose(probs_bf.astype(jnp.float32), ref_probs2, atol=5e-2, rtol=5e-2)

    print("KERNEL_OK")
</pallas_src>

<mosaic_0001>
module attributes {stable_mosaic.version = 11 : i64} {
  func.func @aux_head_kernel(%arg0: i32, %arg1: memref<2x32xf32, #tpu.memory_space<vmem>>, %arg2: memref<32x8xf32, #tpu.memory_space<vmem>>, %arg3: memref<1x8xf32, #tpu.memory_space<vmem>>, %arg4: memref<2x8xf32, #tpu.memory_space<vmem>>, %arg5: memref<2x8xf32, #tpu.memory_space<vmem>>) attributes {dimension_semantics = [#tpu.dimension_semantics<parallel>], iteration_bounds = array<i64: 1>, scalar_prefetch = 0 : i64, scratch_operands = 0 : i64, tpu.core_type = #tpu.core_type<tc>, window_params = [{transform_indices = @transform_0, window_bounds = array<i64: 2, 32>}, {pipeline_mode = #tpu.pipeline_mode<synchronous>, transform_indices = @transform_1, window_bounds = array<i64: 32, 8>}, {pipeline_mode = #tpu.pipeline_mode<synchronous>, transform_indices = @transform_2, window_bounds = array<i64: 1, 8>}, {transform_indices = @transform_3, window_bounds = array<i64: 2, 8>}, {transform_indices = @transform_4, window_bounds = array<i64: 2, 8>}]} {
    %c0 = arith.constant 0 : index
    %c0_0 = arith.constant 0 : index
    %0 = vector.load %arg1[%c0, %c0_0] : memref<2x32xf32, #tpu.memory_space<vmem>>, vector<2x32xf32>
    %c0_1 = arith.constant 0 : index
    %c0_2 = arith.constant 0 : index
    %1 = vector.load %arg2[%c0_1, %c0_2] : memref<32x8xf32, #tpu.memory_space<vmem>>, vector<32x8xf32>
    %c0_3 = arith.constant 0 : index
    %c0_4 = arith.constant 0 : index
    %2 = vector.load %arg3[%c0_3, %c0_4] : memref<1x8xf32, #tpu.memory_space<vmem>>, vector<1x8xf32>
    %cst = arith.constant dense<0.000000e+00> : vector<2x8xf32>
    %3 = tpu.matmul %0, %1, %cst {dimension_numbers = #tpu.dot_dimension_numbers<[1], [0], [0], [1], [0, 0, 1, 1], [], []>} : vector<2x32xf32>, vector<32x8xf32>, vector<2x8xf32> -> vector<2x8xf32>
    %4 = vector.broadcast %2 : vector<1x8xf32> to vector<2x8xf32>
    %5 = arith.addf %3, %4 : vector<2x8xf32>
    %c0_5 = arith.constant 0 : index
    %c0_6 = arith.constant 0 : index
    %6 = vector.load %arg4[%c0_5, %c0_6] : memref<2x8xf32, #tpu.memory_space<vmem>>, vector<2x8xf32>
    tpu.vector_store %arg4[%c0_5, %c0_6], %5 {strides = array<i32>} : memref<2x8xf32, #tpu.memory_space<vmem>>, vector<2x8xf32>,
    %cst_7 = arith.constant dense<0xFF800000> : vector<2xf32>
    %7 = vector.multi_reduction <maximumf>, %5, %cst_7 [1] : vector<2x8xf32> to vector<2xf32>
    %8 = vector.shape_cast %7 : vector<2xf32> to vector<2x1xf32>
    %9 = vector.broadcast %8 : vector<2x1xf32> to vector<2x8xf32>
    %10 = arith.subf %5, %9 : vector<2x8xf32>
    %11 = math.exp %10 : vector<2x8xf32>
    %cst_8 = arith.constant dense<0.000000e+00> : vector<2xf32>
    %12 = vector.multi_reduction <add>, %11, %cst_8 [1] : vector<2x8xf32> to vector<2xf32>
    %13 = vector.shape_cast %12 : vector<2xf32> to vector<2x1xf32>
    %14 = vector.broadcast %13 : vector<2x1xf32> to vector<2x8xf32>
    %15 = arith.divf %11, %14 : vector<2x8xf32>
    %c0_9 = arith.constant 0 : index
    %c0_10 = arith.constant 0 : index
    %16 = vector.load %arg5[%c0_9, %c0_10] : memref<2x8xf32, #tpu.memory_space<vmem>>, vector<2x8xf32>
    tpu.vector_store %arg5[%c0_9, %c0_10], %15 {strides = array<i32>} : memref<2x8xf32, #tpu.memory_space<vmem>>, vector<2x8xf32>,
    return
  }
  func.func @transform_0(%arg0: i32) -> (i32, i32) {
    %c0_i32 = arith.constant 0 : i32
    %c0_i32_0 = arith.constant 0 : i32
    return %arg0, %c0_i32 : i32, i32
  }
  func.func @transform_1(%arg0: i32) -> (i32, i32) {
    %c0_i32 = arith.constant 0 : i32
    %c0_i32_0 = arith.constant 0 : i32
    %c0_i32_1 = arith.constant 0 : i32
    return %c0_i32, %c0_i32_0 : i32, i32
  }
  func.func @transform_2(%arg0: i32) -> (i32, i32) {
    %c0_i32 = arith.constant 0 : i32
    %c0_i32_0 = arith.constant 0 : i32
    %c0_i32_1 = arith.constant 0 : i32
    return %c0_i32, %c0_i32_0 : i32, i32
  }
  func.func @transform_3(%arg0: i32) -> (i32, i32) {
    %c0_i32 = arith.constant 0 : i32
    %c0_i32_0 = arith.constant 0 : i32
    return %arg0, %c0_i32 : i32, i32
  }
  func.func @transform_4(%arg0: i32) -> (i32, i32) {
    %c0_i32 = arith.constant 0 : i32
    %c0_i32_0 = arith.constant 0 : i32
    return %arg0, %c0_i32 : i32, i32
  }
}

module attributes {stable_mosaic.version = 11 : i64} {
  func.func @aux_head_kernel(%arg0: i32, %arg1: memref<2x32xf32, #tpu.memory_space<vmem>>, %arg2: memref<32x8xf32, #tpu.memory_space<vmem>>, %arg3: memref<1x8xf32, #tpu.memory_space<vmem>>, %arg4: memref<2x8xf32, #tpu.memory_space<vmem>>, %arg5: memref<2x8xf32, #tpu.memory_space<vmem>>) attributes {dimension_semantics = [#tpu.dimension_semantics<parallel>], iteration_bounds = array<i64: 1>, scalar_prefetch = 0 : i64, scratch_operands = 0 : i64, tpu.core_type = #tpu.core_type<tc>, window_params = [{transform_indices = @transform_0, window_bounds = array<i64: 2, 32>}, {pipeline_mode = #tpu.pipeline_mode<synchronous>, transform_indices = @transform_1, window_bounds = array<i64: 32, 8>}, {pipeline_mode = #tpu.pipeline_mode<synchronous>, transform_indices = @transform_2, window_bounds = array<i64: 1, 8>}, {transform_indices = @transform_3, window_bounds = array<i64: 2, 8>}, {transform_indices = @transform_4, window_bounds = array<i64: 2, 8>}]} {
    %c0 = arith.constant 0 : index
    %c0_0 = arith.constant 0 : index
    %0 = vector.load %arg1[%c0, %c0_0] : memref<2x32xf32, #tpu.memory_space<vmem>>, vector<2x32xf32>
    %c0_1 = arith.constant 0 : index
    %c0_2 = arith.constant 0 : index
    %1 = vector.load %arg2[%c0_1, %c0_2] : memref<32x8xf32, #tpu.memory_space<vmem>>, vector<32x8xf32>
    %c0_3 = arith.constant 0 : index
    %c0_4 = arith.constant 0 : index
    %2 = vector.load %arg3[%c0_3, %c0_4] : memref<1x8xf32, #tpu.memory_space<vmem>>, vector<1x8xf32>
    %cst = arith.constant dense<0.000000e+00> : vector<2x8xf32>
    %3 = tpu.matmul %0, %1, %cst {dimension_numbers = #tpu.dot_dimension_numbers<[1], [0], [0], [1], [0, 0, 1, 1], [], []>} : vector<2x32xf32>, vector<32x8xf32>, vector<2x8xf32> -> vector<2x8xf32>
    %4 = vector.broadcast %2 : vector<1x8xf32> to vector<2x8xf32>
    %5 = arith.addf %3, %4 : vector<2x8xf32>
    %c0_5 = arith.constant 0 : index
    %c0_6 = arith.constant 0 : index
    %6 = vector.load %arg4[%c0_5, %c0_6] : memref<2x8xf32, #tpu.memory_space<vmem>>, vector<2x8xf32>
    tpu.vector_store %arg4[%c0_5, %c0_6], %5 {strides = array<i32>} : memref<2x8xf32, #tpu.memory_space<vmem>>, vector<2x8xf32>,
    %cst_7 = arith.constant dense<0xFF800000> : vector<2xf32>
    %7 = vector.multi_reduction <maximumf>, %5, %cst_7 [1] : vector<2x8xf32> to vector<2xf32>
    %8 = vector.shape_cast %7 : vector<2xf32> to vector<2x1xf32>
    %9 = vector.broadcast %8 : vector<2x1xf32> to vector<2x8xf32>
    %10 = arith.subf %5, %9 : vector<2x8xf32>
    %11 = math.exp %10 : vector<2x8xf32>
    %cst_8 = arith.constant dense<0.000000e+00> : vector<2xf32>
    %12 = vector.multi_reduction <add>, %11, %cst_8 [1] : vector<2x8xf32> to vector<2xf32>
    %13 = vector.shape_cast %12 : vector<2xf32> to vector<2x1xf32>
    %14 = vector.broadcast %13 : vector<2x1xf32> to vector<2x8xf32>
    %15 = arith.divf %11, %14 : vector<2x8xf32>
    %c0_9 = arith.constant 0 : index
    %c0_10 = arith.constant 0 : index
    %16 = vector.load %arg5[%c0_9, %c0_10] : memref<2x8xf32, #tpu.memory_space<vmem>>, vector<2x8xf32>
    tpu.vector_store %arg5[%c0_9, %c0_10], %15 {strides = array<i32>} : memref<2x8xf32, #tpu.memory_space<vmem>>, vector<2x8xf32>,
    return
  }
  func.func @transform_0(%arg0: i32) -> (i32, i32) {
    %c0_i32 = arith.constant 0 : i32
    %c0_i32_0 = arith.constant 0 : i32
    return %arg0, %c0_i32 : i32, i32
  }
  func.func @transform_1(%arg0: i32) -> (i32, i32) {
    %c0_i32 = arith.constant 0 : i32
    %c0_i32_0 = arith.constant 0 : i32
    %c0_i32_1 = arith.constant 0 : i32
    return %c0_i32, %c0_i32_0 : i32, i32
  }
  func.func @transform_2(%arg0: i32) -> (i32, i32) {
    %c0_i32 = arith.constant 0 : i32
    %c0_i32_0 = arith.constant 0 : i32
    %c0_i32_1 = arith.constant 0 : i32
    return %c0_i32, %c0_i32_0 : i32, i32
  }
  func.func @transform_3(%arg0: i32) -> (i32, i32) {
    %c0_i32 = arith.constant 0 : i32
    %c0_i32_0 = arith.constant 0 : i32
    return %arg0, %c0_i32 : i32, i32
  }
  func.func @transform_4(%arg0: i32) -> (i32, i32) {
    %c0_i32 = arith.constant 0 : i32
    %c0_i32_0 = arith.constant 0 : i32
    return %arg0, %c0_i32 : i32, i32
  }
}

</mosaic_0001>

<llo_original>
// kernel: tpu_custom_call.1
$region0: #{tpu_custom_call.1}
  #allocation0 [shape = 'u32[]', space=smem, size = 0x4, offset = 0x4, fixed_abs, tag = 'smem constant byte address 0x4 - core index']
  #allocation1 [shape = 'u32[144,128]{1,0:T(1,128)}', space=vmem, size = 0x12000, scoped, tag = 'internal scratch']
  %s0 = inlined_call_operand.vmem [shape: f32[2,32], index: 0, kind: input, shape index: {}]
  %s1 = inlined_call_operand.vmem [shape: f32[32,8], index: 1, kind: input, shape index: {}]
  %s2 = inlined_call_operand.vmem [shape: f32[1,8], index: 2, kind: input, shape index: {}]
  %s3 = inlined_call_operand.hbm [shape: f32[2,8], index: 3, kind: output, shape index: {0}]
  %s4 = inlined_call_operand.hbm [shape: f32[2,8], index: 4, kind: output, shape index: {1}]
  %5 = xla_tuple %s3, %s4
  %s6 = sld [smem:[#allocation0]]
  $region30: #{tpu_custom_call.1} parent=0
    _
  %s8 = ssub.s32 1, %s6
  %s9 = scalar_select 0, %s8, %s6
  $region1: #{tpu_custom_call.1} parent=0
    #allocation2 [shape = 'u8[1024]{0}', space=vmem, size = 0x400, scoped, tag = 'output window, operand 0, single buffered']
    #allocation3 [shape = 's32[1]{0}', space=sflag, size = 0x4, scoped, tag = 'scoped memory for tpu_custom_call.1']
    #allocation4 [shape = 'u8[1024]{0}', space=vmem, size = 0x400, scoped, tag = 'output window, operand 1, single buffered']
    #allocation5 [shape = 's32[1]{0}', space=sflag, size = 0x4, scoped, tag = 'scoped memory for tpu_custom_call.1']
    %10 = vsyncpa [#allocation3], 0
    %11 = vsyncpa [#allocation5], 0
    // Predicated region
    $region2: #{tpu_custom_call.1} parent=1 // pred_check
      _
    $region3: #{tpu_custom_call.1} parent=1 // pred_check_branch
      %13 = sbr.rel (0) target = $region5
    $region4: #{tpu_custom_call.1} parent=1 // pred_region
      _
    $region5: #{tpu_custom_call.1} parent=1 // pred_fallthru
      _
    // Predicated region
    $region6: #{tpu_custom_call.1} parent=1 // pred_check
      _
    $region7: #{tpu_custom_call.1} parent=1 // pred_check_branch
      %15 = sbr.rel (0) target = $region9
    $region8: #{tpu_custom_call.1} parent=1 // pred_region
      _
    $region9: #{tpu_custom_call.1} parent=1 // pred_fallthru
      _
    // Predicated region
    $region10: #{tpu_custom_call.1} parent=1 // pred_check
      _
    $region11: #{tpu_custom_call.1} parent=1 // pred_check_branch
      %17 = sbr.rel (0) target = $region13
    $region12: #{tpu_custom_call.1} parent=1 // pred_region
      _
    $region13: #{tpu_custom_call.1} parent=1 // pred_fallthru
      _
    %v18 = vld [vmem:[%s0] sm:$0x3]
    %v19 = vld [vmem:[%s1] sm:$0xff]
    %v20 = vld [vmem:[%s1 + $0x8] sm:$0xff]
    %v21 = vld [vmem:[%s1 + $0x10] sm:$0xff]
    %v22 = vld [vmem:[%s1 + $0x18] sm:$0xff]
    %v23 = vld [vmem:[%s2] sm:$0x1]
    %v25 = vlaneseq
    %v26 = vshrl.u32 %v25, 7
    %v27 = vsub.s32 0, %v26
    %v28 = vrot.slane %v23, %v27
    %vm30 = vcmask 261120
    %v32 = vsel %vm30, %v18, 0
    %34 = vmatprep.subr.mxu0 0.0
    %35 = vmatpush1.msra.mxu0 %v19
    %36 = vmatprep.subr.mxu0 0.0
    %37 = vmatpush1.msra.mxu0 %v20
    %38 = vmatprep.subr.mxu0 0.0
    %39 = vmatpush1.msra.mxu0 %v21
    %40 = vmatprep.subr.mxu0 0.0
    %41 = vmatpush1.msra.mxu0 %v22
    %42 = vmatprep.subr.mxu0 0.0
    %43 = vmatpush1.msra.mxu0 0.0
    %44 = vmatprep.subr.mxu0 0.0
    %45 = vmatpush1.msra.mxu0 0.0
    %46 = vmatprep.subr.mxu0 0.0
    %47 = vmatpush1.msra.mxu0 0.0
    %48 = vmatprep.subr.mxu0 0.0
    %49 = vmatpush1.msra.mxu0 0.0
    %50 = vmatprep.subr.mxu0 0.0
    %51 = vmatpush1.msra.mxu0 0.0
    %52 = vmatprep.subr.mxu0 0.0
    %53 = vmatpush1.msra.mxu0 0.0
    %54 = vmatprep.subr.mxu0 0.0
    %55 = vmatpush1.msra.mxu0 0.0
    %56 = vmatprep.subr.mxu0 0.0
    %57 = vmatpush1.msra.mxu0 0.0
    %58 = vmatprep.subr.mxu0 0.0
    %59 = vmatpush1.msra.mxu0 0.0
    %60 = vmatprep.subr.mxu0 0.0
    %61 = vmatpush1.msra.mxu0 0.0
    %62 = vmatprep.subr.mxu0 0.0
    %63 = vmatpush1.msra.mxu0 0.0
    %64 = vmatprep.subr.mxu0 0.0
    %65 = vmatpush1.msra.mxu0 0.0
    %66 = vmatprep.subr.mxu0 0.0
    %67 = vmatpush1.msra.mxu0 0.0
    %68 = vmatprep.subr.mxu0 0.0
    %69 = vmatpush1.msra.mxu0 0.0
    %70 = vmatprep.subr.mxu0 0.0
    %71 = vmatpush1.msra.mxu0 0.0
    %72 = vmatprep.subr.mxu0 0.0
    %73 = vmatpush1.msra.mxu0 0.0
    %74 = vmatprep.subr.mxu0 0.0
    %75 = vmatpush1.msra.mxu0 0.0
    %76 = vmatprep.subr.mxu0 0.0
    %77 = vmatpush1.msra.mxu0 0.0
    %78 = vmatprep.subr.mxu0 0.0
    %79 = vmatpush1.msra.mxu0 0.0
    %80 = vmatprep.subr.mxu0 0.0
    %81 = vmatpush1.msra.mxu0 0.0
    %82 = vmatprep.subr.mxu0 0.0
    %83 = vmatpush1.msra.mxu0 0.0
    %84 = vmatprep.subr.mxu0 0.0
    %85 = vmatpush1.msra.mxu0 0.0
    %86 = vmatprep.subr.mxu0 0.0
    %87 = vmatpush1.msra.mxu0 0.0
    %88 = vmatprep.subr.mxu0 0.0
    %89 = vmatpush1.msra.mxu0 0.0
    %90 = vmatprep.subr.mxu0 0.0
    %91 = vmatpush1.msra.mxu0 0.0
    %92 = vmatprep.subr.mxu0 0.0
    %93 = vmatpush1.msra.mxu0 0.0
    %94 = vmatprep.subr.mxu0 0.0
    %95 = vmatpush1.msra.mxu0 0.0
    %96 = vmatprep.subr.mxu0 0.0
    %97 = vmatpush1.msra.mxu0 0.0
    %98 = vmatprep.mubr.f32.mxu0 0.0
    %99 = vmatmul.mubr.f32.gmra.mrb[0].mxu0 %v32
    %v100 = vpop.f32.mrb[0].mxu0
    %v101 = vadd.f32 %v28, %v100
    %v102 = vpop.f32.mrb[0].mxu0
    %103 = vdwg.mxu0
    %vm104 = vcmask 58368
    %105 = vst.msk [vmem:[#allocation2] sm:$0x3] %vm104, %v101
    %v106 = vsel %vm104, %v101, -inf
    %107 = vmax.xlane.f32.xlu0 %v106
    %v108 = vpop.xlane.xlu0 %107
    %v109 = vsub.f32 %v101, %v108
    %v110 = vmul.f32 %v109, 1.442695
    %v111 = vpow.pop %v110
    %v112 = vsel %vm104, %v111, 0.0
    %113 = vadd.xlane.f32.xlu0 %v112
    %v114 = vpop.xlane.xlu0 %113
    %v115 = vrcp.pop %v114
    %v116 = vmul.f32 %v111, %v115
    %117 = vst.msk [vmem:[#allocation4] sm:$0x3] %vm104, %v116
    // Predicated region
    $region14: #{tpu_custom_call.1} parent=1 // pred_check
      _
    $region15: #{tpu_custom_call.1} parent=1 // pred_check_branch
      %119 = sbr.rel (0) target = $region17
    $region16: #{tpu_custom_call.1} parent=1 // pred_region
      %s121 = ssub.s32 32, 32
      %122 = vsyncadd [#allocation3], %s121
      %s124 = sshll.u32 [#allocation2], 4
      %s125 = int_to_ptr.vmem [resolvable:$true] %s124
      %127 = dma.vmem_to_hbm [thread:$0]  %s125, 32, %s3, [#allocation3]
    $region17: #{tpu_custom_call.1} parent=1 // pred_fallthru
      _
    // Predicated region
    $region18: #{tpu_custom_call.1} parent=1 // pred_check
      _
    $region19: #{tpu_custom_call.1} parent=1 // pred_check_branch
      %129 = sbr.rel (0) target = $region21
    $region20: #{tpu_custom_call.1} parent=1 // pred_region
      %s131 = ssub.s32 32, 32
      %132 = vsyncadd [#allocation5], %s131
      %s134 = sshll.u32 [#allocation4], 4
      %s135 = int_to_ptr.vmem [resolvable:$true] %s134
      %137 = dma.vmem_to_hbm [thread:$0]  %s135, 32, %s4, [#allocation5]
    $region21: #{tpu_custom_call.1} parent=1 // pred_fallthru
      _
    // Predicated region
    $region22: #{tpu_custom_call.1} parent=1 // pred_check
      _
    $region23: #{tpu_custom_call.1} parent=1 // pred_check_branch
      %139 = sbr.rel (0) target = $region25
    $region24: #{tpu_custom_call.1} parent=1 // pred_region
      %140 = dma.done [#allocation3], 32
    $region25: #{tpu_custom_call.1} parent=1 // pred_fallthru
      _
    // Predicated region
    $region26: #{tpu_custom_call.1} parent=1 // pred_check
      _
    $region27: #{tpu_custom_call.1} parent=1 // pred_check_branch
      %142 = sbr.rel (0) target = $region29
    $region28: #{tpu_custom_call.1} parent=1 // pred_region
      %143 = dma.done [#allocation5], 32
    $region29: #{tpu_custom_call.1} parent=1 // pred_fallthru
      _
    %144 = vsyncpa [#allocation3], 1
    %145 = vsyncpa [#allocation5], 1

// kernel: tpu_custom_call.1
$region0: #{tpu_custom_call.1}
  #allocation0 [shape = 'u32[]', space=smem, size = 0x4, offset = 0x4, fixed_abs, tag = 'smem constant byte address 0x4 - core index']
  #allocation1 [shape = 'u32[144,128]{1,0:T(1,128)}', space=vmem, size = 0x12000, scoped, tag = 'internal scratch']
  %s0 = inlined_call_operand.vmem [shape: f32[2,32], index: 0, kind: input, shape index: {}]
  %s1 = inlined_call_operand.vmem [shape: f32[32,8], index: 1, kind: input, shape index: {}]
  %s2 = inlined_call_operand.vmem [shape: f32[1,8], index: 2, kind: input, shape index: {}]
  %s3 = inlined_call_operand.hbm [shape: f32[2,8], index: 3, kind: output, shape index: {0}]
  %s4 = inlined_call_operand.hbm [shape: f32[2,8], index: 4, kind: output, shape index: {1}]
  %5 = xla_tuple %s3, %s4
  %s6 = sld [smem:[#allocation0]]
  $region30: #{tpu_custom_call.1} parent=0
    _
  %s8 = ssub.s32 1, %s6
  %s9 = scalar_select 0, %s8, %s6
  $region1: #{tpu_custom_call.1} parent=0
    #allocation2 [shape = 'u8[1024]{0}', space=vmem, size = 0x400, scoped, tag = 'output window, operand 0, single buffered']
    #allocation3 [shape = 's32[1]{0}', space=sflag, size = 0x4, scoped, tag = 'scoped memory for tpu_custom_call.1']
    #allocation4 [shape = 'u8[1024]{0}', space=vmem, size = 0x400, scoped, tag = 'output window, operand 1, single buffered']
    #allocation5 [shape = 's32[1]{0}', space=sflag, size = 0x4, scoped, tag = 'scoped memory for tpu_custom_call.1']
    %10 = vsyncpa [#allocation3], 0
    %11 = vsyncpa [#allocation5], 0
    // Predicated region
    $region2: #{tpu_custom_call.1} parent=1 // pred_check
      _
    $region3: #{tpu_custom_call.1} parent=1 // pred_check_branch
      %13 = sbr.rel (0) target = $region5
    $region4: #{tpu_custom_call.1} parent=1 // pred_region
      _
    $region5: #{tpu_custom_call.1} parent=1 // pred_fallthru
      _
    // Predicated region
    $region6: #{tpu_custom_call.1} parent=1 // pred_check
      _
    $region7: #{tpu_custom_call.1} parent=1 // pred_check_branch
      %15 = sbr.rel (0) target = $region9
    $region8: #{tpu_custom_call.1} parent=1 // pred_region
      _
    $region9: #{tpu_custom_call.1} parent=1 // pred_fallthru
      _
    // Predicated region
    $region10: #{tpu_custom_call.1} parent=1 // pred_check
      _
    $region11: #{tpu_custom_call.1} parent=1 // pred_check_branch
      %17 = sbr.rel (0) target = $region13
    $region12: #{tpu_custom_call.1} parent=1 // pred_region
      _
    $region13: #{tpu_custom_call.1} parent=1 // pred_fallthru
      _
    %v18 = vld [vmem:[%s0] sm:$0x3]
    %v19 = vld [vmem:[%s1] sm:$0xff]
    %v20 = vld [vmem:[%s1 + $0x8] sm:$0xff]
    %v21 = vld [vmem:[%s1 + $0x10] sm:$0xff]
    %v22 = vld [vmem:[%s1 + $0x18] sm:$0xff]
    %v23 = vld [vmem:[%s2] sm:$0x1]
    %v25 = vlaneseq
    %v26 = vshrl.u32 %v25, 7
    %v27 = vsub.s32 0, %v26
    %v28 = vrot.slane %v23, %v27
    %vm30 = vcmask 261120
    %v32 = vsel %vm30, %v18, 0
    %34 = vmatprep.subr.mxu0 0.0
    %35 = vmatpush1.msra.mxu0 %v19
    %36 = vmatprep.subr.mxu0 0.0
    %37 = vmatpush1.msra.mxu0 %v20
    %38 = vmatprep.subr.mxu0 0.0
    %39 = vmatpush1.msra.mxu0 %v21
    %40 = vmatprep.subr.mxu0 0.0
    %41 = vmatpush1.msra.mxu0 %v22
    %42 = vmatprep.subr.mxu0 0.0
    %43 = vmatpush1.msra.mxu0 0.0
    %44 = vmatprep.subr.mxu0 0.0
    %45 = vmatpush1.msra.mxu0 0.0
    %46 = vmatprep.subr.mxu0 0.0
    %47 = vmatpush1.msra.mxu0 0.0
    %48 = vmatprep.subr.mxu0 0.0
    %49 = vmatpush1.msra.mxu0 0.0
    %50 = vmatprep.subr.mxu0 0.0
    %51 = vmatpush1.msra.mxu0 0.0
    %52 = vmatprep.subr.mxu0 0.0
    %53 = vmatpush1.msra.mxu0 0.0
    %54 = vmatprep.subr.mxu0 0.0
    %55 = vmatpush1.msra.mxu0 0.0
    %56 = vmatprep.subr.mxu0 0.0
    %57 = vmatpush1.msra.mxu0 0.0
    %58 = vmatprep.subr.mxu0 0.0
    %59 = vmatpush1.msra.mxu0 0.0
    %60 = vmatprep.subr.mxu0 0.0
    %61 = vmatpush1.msra.mxu0 0.0
    %62 = vmatprep.subr.mxu0 0.0
    %63 = vmatpush1.msra.mxu0 0.0
    %64 = vmatprep.subr.mxu0 0.0
    %65 = vmatpush1.msra.mxu0 0.0
    %66 = vmatprep.subr.mxu0 0.0
    %67 = vmatpush1.msra.mxu0 0.0
    %68 = vmatprep.subr.mxu0 0.0
    %69 = vmatpush1.msra.mxu0 0.0
    %70 = vmatprep.subr.mxu0 0.0
    %71 = vmatpush1.msra.mxu0 0.0
    %72 = vmatprep.subr.mxu0 0.0
    %73 = vmatpush1.msra.mxu0 0.0
    %74 = vmatprep.subr.mxu0 0.0
    %75 = vmatpush1.msra.mxu0 0.0
    %76 = vmatprep.subr.mxu0 0.0
    %77 = vmatpush1.msra.mxu0 0.0
    %78 = vmatprep.subr.mxu0 0.0
    %79 = vmatpush1.msra.mxu0 0.0
    %80 = vmatprep.subr.mxu0 0.0
    %81 = vmatpush1.msra.mxu0 0.0
    %82 = vmatprep.subr.mxu0 0.0
    %83 = vmatpush1.msra.mxu0 0.0
    %84 = vmatprep.subr.mxu0 0.0
    %85 = vmatpush1.msra.mxu0 0.0
    %86 = vmatprep.subr.mxu0 0.0
    %87 = vmatpush1.msra.mxu0 0.0
    %88 = vmatprep.subr.mxu0 0.0
    %89 = vmatpush1.msra.mxu0 0.0
    %90 = vmatprep.subr.mxu0 0.0
    %91 = vmatpush1.msra.mxu0 0.0
    %92 = vmatprep.subr.mxu0 0.0
    %93 = vmatpush1.msra.mxu0 0.0
    %94 = vmatprep.subr.mxu0 0.0
    %95 = vmatpush1.msra.mxu0 0.0
    %96 = vmatprep.subr.mxu0 0.0
    %97 = vmatpush1.msra.mxu0 0.0
    %98 = vmatprep.mubr.f32.mxu0 0.0
    %99 = vmatmul.mubr.f32.gmra.mrb[0].mxu0 %v32
    %v100 = vpop.f32.mrb[0].mxu0
    %v101 = vadd.f32 %v28, %v100
    %v102 = vpop.f32.mrb[0].mxu0
    %103 = vdwg.mxu0
    %vm104 = vcmask 58368
    %105 = vst.msk [vmem:[#allocation2] sm:$0x3] %vm104, %v101
    %v106 = vsel %vm104, %v101, -inf
    %107 = vmax.xlane.f32.xlu0 %v106
    %v108 = vpop.xlane.xlu0 %107
    %v109 = vsub.f32 %v101, %v108
    %v110 = vmul.f32 %v109, 1.442695
    %v111 = vpow.pop %v110
    %v112 = vsel %vm104, %v111, 0.0
    %113 = vadd.xlane.f32.xlu0 %v112
    %v114 = vpop.xlane.xlu0 %113
    %v115 = vrcp.pop %v114
    %v116 = vmul.f32 %v111, %v115
    %117 = vst.msk [vmem:[#allocation4] sm:$0x3] %vm104, %v116
    // Predicated region
    $region14: #{tpu_custom_call.1} parent=1 // pred_check
      _
    $region15: #{tpu_custom_call.1} parent=1 // pred_check_branch
      %119 = sbr.rel (0) target = $region17
    $region16: #{tpu_custom_call.1} parent=1 // pred_region
      %s121 = ssub.s32 32, 32
      %122 = vsyncadd [#allocation3], %s121
      %s124 = sshll.u32 [#allocation2], 4
      %s125 = int_to_ptr.vmem [resolvable:$true] %s124
      %127 = dma.vmem_to_hbm [thread:$0]  %s125, 32, %s3, [#allocation3]
    $region17: #{tpu_custom_call.1} parent=1 // pred_fallthru
      _
    // Predicated region
    $region18: #{tpu_custom_call.1} parent=1 // pred_check
      _
    $region19: #{tpu_custom_call.1} parent=1 // pred_check_branch
      %129 = sbr.rel (0) target = $region21
    $region20: #{tpu_custom_call.1} parent=1 // pred_region
      %s131 = ssub.s32 32, 32
      %132 = vsyncadd [#allocation5], %s131
      %s134 = sshll.u32 [#allocation4], 4
      %s135 = int_to_ptr.vmem [resolvable:$true] %s134
      %137 = dma.vmem_to_hbm [thread:$0]  %s135, 32, %s4, [#allocation5]
    $region21: #{tpu_custom_call.1} parent=1 // pred_fallthru
      _
    // Predicated region
    $region22: #{tpu_custom_call.1} parent=1 // pred_check
      _
    $region23: #{tpu_custom_call.1} parent=1 // pred_check_branch
      %139 = sbr.rel (0) target = $region25
    $region24: #{tpu_custom_call.1} parent=1 // pred_region
      %140 = dma.done [#allocation3], 32
    $region25: #{tpu_custom_call.1} parent=1 // pred_fallthru
      _
    // Predicated region
    $region26: #{tpu_custom_call.1} parent=1 // pred_check
      _
    $region27: #{tpu_custom_call.1} parent=1 // pred_check_branch
      %142 = sbr.rel (0) target = $region29
    $region28: #{tpu_custom_call.1} parent=1 // pred_region
      %143 = dma.done [#allocation5], 32
    $region29: #{tpu_custom_call.1} parent=1 // pred_fallthru
      _
    %144 = vsyncpa [#allocation3], 1
    %145 = vsyncpa [#allocation5], 1

</llo_original>
